<compile_context>
chip_gen: v5e
topology: v5e:2x2
jax: 0.10.0
libtpu: 0.0.40
codegen_flags: <defaults>
</compile_context>

<pallas_src>
import functools

import jax
import jax.numpy as jnp
import numpy as np
from jax import lax
from jax.experimental import pallas as pl
from jax.experimental.pallas import tpu as pltpu

EPS = float(np.finfo(np.float32).eps)  # torch.finfo(torch.float).eps

# ---- model dimensions (small, consistent with the module) ----
X_DIM = 32                 # frame is (1, 32, 32)
H_DIM = 32                 # h_dim != 1024 -> FastEncoder/FastDecoder branch
Z_DIM = 16
N_LAYERS = 1               # TODO(synk): kernel implements the n_layers=1 GRU only
P = X_DIM * X_DIM          # flattened pixels per frame
SLAB = 4 * H_DIM           # 128 lanes per step: [enc_ms | zt_tilde | h_t | softplus(enc_ms)]

# Original (unfused) parameter names — mirror the torch module's layers.
WEIGHT_NAMES = [
    "W_emb", "b_emb",                       # embed (FastEncoder stand-in)
    "W_enc1x", "W_enc1h", "b_enc1",         # enc layer 1 (acts on cat([x_tilde, h]))
    "W_enc2", "b_enc2",                     # enc layer 2
    "W_encm", "b_encm",                     # enc_mean
    "W_encs", "b_encs",                     # enc_std (softplus)
    "W_phiz", "b_phiz",                     # phi_z
    "W_dec1z", "W_dec1h", "b_dec1",         # dec layer 1 (acts on cat([z_tilde, h]))
    "W_dec2", "b_dec2",                     # dec layer 2 -> pixels
    "W_pri", "b_pri",                       # prior
    "W_prim", "b_prim",                     # prior_mean
    "W_pris", "b_pris",                     # prior_std (softplus)
    "W_ir", "W_iz", "W_in_",                # GRU input weights, each (2H, H)
    "W_hr", "W_hz", "W_hn",                 # GRU hidden weights, each (H, H)
]

# Fused parameter sets for the recurrent (pass 2) and parallel (pass 3) kernels.
REC_NAMES = ["W_big", "b_enc1", "W_enc2", "b_enc2", "W_enc_ms", "b_enc_ms",
             "W_phiz", "b_phiz", "W_i"]
PAR_NAMES = ["W_dp", "b_dp", "W_dec2", "b_dec2", "W_pri_ms", "b_pri_ms"]


def _softplus(x):
    # numerically-stable softplus (same formula used in the pure-JAX reference)
    return jnp.log1p(jnp.exp(-jnp.abs(x))) + jnp.maximum(x, 0.0)


def _fuse_params(p):
    """Host-side weight fusion: fewer, wider matmuls; no in-kernel weight slicing."""
    H = H_DIM
    zeros3h = jnp.zeros((H, 3 * H), jnp.float32)
    zeros1h = jnp.zeros((H, H), jnp.float32)
    w_h = jnp.concatenate([p["W_hr"], p["W_hz"], p["W_hn"]], axis=1)        # (H, 3H)
    # W_big: [[W_enc1x, 0], [W_enc1h, W_h]]   -> one (2H, 4H=128) matmul on [x_tilde|h]
    w_big = jnp.concatenate(
        [jnp.concatenate([p["W_enc1x"], zeros3h], axis=1),
         jnp.concatenate([p["W_enc1h"], w_h], axis=1)], axis=0)             # (2H, 4H)
    # W_dp: [[W_dec1z, 0], [W_dec1h, W_pri]]  -> one (2H, 2H) matmul on [z_tilde|h]
    w_dp = jnp.concatenate(
        [jnp.concatenate([p["W_dec1z"], zeros1h], axis=1),
         jnp.concatenate([p["W_dec1h"], p["W_pri"]], axis=1)], axis=0)      # (2H, 2H)
    return {
        "W_emb": p["W_emb"], "b_emb": p["b_emb"],
        "W_big": w_big,
        "b_enc1": p["b_enc1"],
        "W_enc2": p["W_enc2"], "b_enc2": p["b_enc2"],
        "W_enc_ms": jnp.concatenate([p["W_encm"], p["W_encs"]], axis=1),    # (H, 2Z)
        "b_enc_ms": jnp.concatenate([p["b_encm"], p["b_encs"]], axis=1),    # (1, 2Z)
        "W_phiz": p["W_phiz"], "b_phiz": p["b_phiz"],
        "W_i": jnp.concatenate([p["W_ir"], p["W_iz"], p["W_in_"]], axis=1), # (2H, 3H)
        "W_dp": w_dp,
        "b_dp": jnp.concatenate([p["b_dec1"], p["b_pri"]], axis=1),         # (1, 2H)
        "W_dec2": p["W_dec2"], "b_dec2": p["b_dec2"],
        "W_pri_ms": jnp.concatenate([p["W_prim"], p["W_pris"]], axis=1),    # (H, 2Z)
        "b_pri_ms": jnp.concatenate([p["b_prim"], p["b_pris"]], axis=1),    # (1, 2Z)
    }


# ---------------------------------------------------------------------------
# Pass 1: non-recurrent embed over all T*B frames (parallel grid, bf16 MXU)
# ---------------------------------------------------------------------------
def _embed_kernel(x_ref, w_ref, b_ref, out_ref):
    y = jnp.dot(x_ref[...].astype(jnp.bfloat16), w_ref[...].astype(jnp.bfloat16),
                preferred_element_type=jnp.float32) + b_ref[...]
    out_ref[...] = jnp.maximum(y, 0.0)


# ---------------------------------------------------------------------------
# Pass 2: recurrent VRNN step loop (only h-carrying math; static unrolled loop)
# ---------------------------------------------------------------------------
def _vrnn_recurrent_kernel(xt_ref, eps_ref,
                           w_big_ref, b_enc1_ref, w_enc2_ref, b_enc2_ref,
                           w_enc_ms_ref, b_enc_ms_ref, w_phiz_ref, b_phiz_ref,
                           w_i_ref, slab_ref, h_scr, *, t_chunk, unroll):
    @pl.when(pl.program_id(0) == 0)
    def _():
        h_scr[...] = jnp.zeros_like(h_scr)

    relu = lambda v: jnp.maximum(v, 0.0)
    dot = lambda a, b: jnp.dot(a, b, preferred_element_type=jnp.float32)

    # Weight loads hoisted out of the time loop (constant-indexed, VMEM resident).
    w_big = w_big_ref[...]; b_enc1 = b_enc1_ref[...]
    w_enc2 = w_enc2_ref[...]; b_enc2 = b_enc2_ref[...]
    w_enc_ms = w_enc_ms_ref[...]; b_enc_ms = b_enc_ms_ref[...]
    w_phiz = w_phiz_ref[...]; b_phiz = b_phiz_ref[...]
    w_i = w_i_ref[...]

    H = H_DIM

    def body(t, h):
        xt_tilde = xt_ref[t]                       # (B, H)  precomputed embed activation
        noise = eps_ref[t]                         # (B, Z)  reparameterization noise

        # one fused (2H, 4H=128) matmul -> [enc1 pre-act | GRU gh], full-vreg output
        xh = jnp.concatenate([xt_tilde, h], axis=1)                 # (B, 2H)
        fused = dot(xh, w_big)                                      # (B, 4H)
        e1 = relu(fused[:, :H] + b_enc1)
        gh = fused[:, H:]                                           # (B, 3H) = h @ W_h

        enc_t = relu(dot(e1, w_enc2) + b_enc2)
        enc_ms = dot(enc_t, w_enc_ms) + b_enc_ms                    # (B, 2Z) [mean|std pre]
        enc_sp = _softplus(enc_ms)
        enc_mean = enc_ms[:, :Z_DIM]
        enc_std = enc_sp[:, Z_DIM:]

        # reparameterized sample + phi_z
        zt = noise * enc_std + enc_mean
        zt_tilde = relu(dot(zt, w_phiz) + b_phiz)                   # (B, H)

        # GRU cell (single layer, bias=False); one fused input-gate matmul
        gi = dot(jnp.concatenate([xt_tilde, zt_tilde], axis=1), w_i)  # (B, 3H)
        r = jax.nn.sigmoid(gi[:, :H] + gh[:, :H])
        zg = jax.nn.sigmoid(gi[:, H:2 * H] + gh[:, H:2 * H])
        n = jnp.tanh(gi[:, 2 * H:] + r * gh[:, 2 * H:])
        h_new = (1.0 - zg) * n + zg * h

        # single lane-dense (B, 128) store per step; dec/prior/KLD/MSE read it in pass 3
        slab_ref[t] = jnp.concatenate([enc_ms, zt_tilde, h, enc_sp], axis=1)
        return h_new

    h_final = lax.fori_loop(0, t_chunk, body, h_scr[...], unroll=unroll)
    h_scr[...] = h_final


# ---------------------------------------------------------------------------
# Pass 3: decoder / prior / KLD / MSE as wide batched matmuls (parallel grid)
# ---------------------------------------------------------------------------
def _vrnn_parallel_kernel(slab_ref, x_ref, w_dp_ref, b_dp_ref, w_dec2_ref,
                          b_dec2_ref, w_pri_ms_ref, b_pri_ms_ref,
                          kld_ref, rec_ref, *, rows_per_block, n_valid_rows):
    c = pl.program_id(0)
    relu = lambda v: jnp.maximum(v, 0.0)
    dot = lambda a, b: jnp.dot(a, b, preferred_element_type=jnp.float32)

    slab = slab_ref[...]                          # (RB, 4H)
    enc_mean = slab[:, :Z_DIM]
    enc_std = slab[:, 3 * H_DIM + Z_DIM:]
    zh = slab[:, H_DIM:3 * H_DIM]                 # (RB, 2H) = [zt_tilde | h_t]

    # fused dec layer 1 | prior layer 1: one (2H, 2H) matmul
    dp = relu(dot(zh, w_dp_ref[...]) + b_dp_ref[...])               # (RB, 2H)
    d1 = dp[:, :H_DIM]
    pri = dp[:, H_DIM:]

    # decoder layer 2 -> pixels (bf16 MXU operands, f32 accumulate), batched over T*B
    logits = jnp.dot(d1.astype(jnp.bfloat16), w_dec2_ref[...].astype(jnp.bfloat16),
                     preferred_element_type=jnp.float32) + b_dec2_ref[...]
    xt_hat = jax.nn.sigmoid(logits)                                  # (RB, P)

    pri_ms = dot(pri, w_pri_ms_ref[...]) + b_pri_ms_ref[...]        # (RB, 2Z)
    prior_mean = pri_ms[:, :Z_DIM]
    prior_std = _softplus(pri_ms)[:, Z_DIM:]

    # validity mask for padded-tail timesteps (row = t*B + b; padded rows come last)
    row = c * rows_per_block + lax.broadcasted_iota(jnp.int32, (slab.shape[0], 1), 0)
    valid = row < n_valid_rows

    rec_rows = jnp.sum((xt_hat - x_ref[...]) ** 2, axis=1, keepdims=True)     # (RB, 1)
    kld_el = (2.0 * jnp.log(prior_std + EPS) - 2.0 * jnp.log(enc_std + EPS)
              + (enc_std ** 2 + (enc_mean - prior_mean) ** 2) / (prior_std ** 2) - 1.0)
    kld_rows = jnp.sum(kld_el, axis=1, keepdims=True)                          # (RB, 1)

    rec_ref[...] = jnp.sum(jnp.where(valid, rec_rows, 0.0)).reshape(1, 1, 1)
    kld_ref[...] = (0.5 * jnp.sum(jnp.where(valid, kld_rows, 0.0))).reshape(1, 1, 1)


# ---------------------------------------------------------------------------
# Wrapper
# ---------------------------------------------------------------------------
def vrnn_forward(x_frames, eps, params, *, t_chunk=32):
    """x_frames: (B, T, 1, X_DIM, X_DIM) float32 (PyTorch NCHW per frame).
       eps:      (T, B, Z_DIM) reparameterization noise.
       Returns (kld_loss, reconstruction_loss, (enc_means, enc_stds)) with
       enc_means / enc_stds of shape (T, B, Z_DIM)."""
    B, T = x_frames.shape[0], x_frames.shape[1]
    t_chunk = max(1, min(t_chunk, T))
    num_chunks = pl.cdiv(T, t_chunk)
    T_pad = num_chunks * t_chunk
    unroll = True if t_chunk <= 16 else 4

    fused = _fuse_params(params)

    x_flat = jnp.transpose(x_frames.reshape(B, T, P), (1, 0, 2))      # (T, B, P)
    eps_p = eps
    if T_pad != T:
        # padded steps run through the GRU (last chunk only) but are masked out of
        # the losses in pass 3 and sliced off the returned means/stds.
        x_flat = jnp.pad(x_flat, ((0, T_pad - T), (0, 0), (0, 0)))
        eps_p = jnp.pad(eps, ((0, T_pad - T), (0, 0), (0, 0)))

    rows_total = T_pad * B
    rows_blk = t_chunk * B
    rows_grid = num_chunks
    if num_chunks > 1 and rows_blk % 8 != 0:
        rows_blk, rows_grid = rows_total, 1       # keep the (8,128) sublane rule happy

    x2d = x_flat.reshape(rows_total, P)

    # ---- pass 1: embed all frames at once (no h dependence) ----
    xt_tilde2d = pl.pallas_call(
        _embed_kernel,
        out_shape=jax.ShapeDtypeStruct((rows_total, H_DIM), jnp.float32),
        grid_spec=pltpu.PrefetchScalarGridSpec(
            num_scalar_prefetch=0, grid=(rows_grid,),
            in_specs=[pl.BlockSpec((rows_blk, P), lambda i: (i, 0)),
                      pl.BlockSpec((P, H_DIM), lambda i: (0, 0)),
                      pl.BlockSpec((1, H_DIM), lambda i: (0, 0))],
            out_specs=pl.BlockSpec((rows_blk, H_DIM), lambda i: (i, 0))),
        compiler_params=pltpu.CompilerParams(dimension_semantics=("parallel",)),
    )(x2d, fused["W_emb"], fused["b_emb"])
    xt_tilde_all = xt_tilde2d.reshape(T_pad, B, H_DIM)

    # ---- pass 2: recurrent time loop (chunked grid, sequential in time) ----
    rec_w = [fused[n] for n in REC_NAMES]

    def const_spec(a):
        nd = a.ndim
        return pl.BlockSpec(a.shape, lambda c, _nd=nd: (0,) * _nd)

    slab = pl.pallas_call(
        functools.partial(_vrnn_recurrent_kernel, t_chunk=t_chunk, unroll=unroll),
        out_shape=jax.ShapeDtypeStruct((T_pad, B, SLAB), jnp.float32),
        grid_spec=pltpu.PrefetchScalarGridSpec(
            num_scalar_prefetch=0, grid=(num_chunks,),
            in_specs=[pl.BlockSpec((t_chunk, B, H_DIM), lambda c: (c, 0, 0)),
                      pl.BlockSpec((t_chunk, B, Z_DIM), lambda c: (c, 0, 0))]
                     + [const_spec(w) for w in rec_w],
            out_specs=pl.BlockSpec((t_chunk, B, SLAB), lambda c: (c, 0, 0)),
            scratch_shapes=[pltpu.VMEM((B, H_DIM), jnp.float32)]),    # GRU hidden state
        compiler_params=pltpu.CompilerParams(
            dimension_semantics=("arbitrary",)),                      # sequential in time
    )(xt_tilde_all, eps_p, *rec_w)

    # ---- pass 3: decoder / prior / KLD / MSE, batched over all timesteps ----
    par_w = [fused[n] for n in PAR_NAMES]
    slab2d = slab.reshape(rows_total, SLAB)

    kld_part, rec_part = pl.pallas_call(
        functools.partial(_vrnn_parallel_kernel,
                          rows_per_block=rows_blk, n_valid_rows=T * B),
        out_shape=(jax.ShapeDtypeStruct((rows_grid, 1, 1), jnp.float32),
                   jax.ShapeDtypeStruct((rows_grid, 1, 1), jnp.float32)),
        grid_spec=pltpu.PrefetchScalarGridSpec(
            num_scalar_prefetch=0, grid=(rows_grid,),
            in_specs=[pl.BlockSpec((rows_blk, SLAB), lambda i: (i, 0)),
                      pl.BlockSpec((rows_blk, P), lambda i: (i, 0))]
                     + [const_spec(w) for w in par_w],
            out_specs=(pl.BlockSpec((1, 1, 1), lambda i: (i, 0, 0)),
                       pl.BlockSpec((1, 1, 1), lambda i: (i, 0, 0)))),
        compiler_params=pltpu.CompilerParams(dimension_semantics=("parallel",)),
    )(slab2d, x2d, *par_w)

    kld = jnp.sum(kld_part)
    rec = jnp.sum(rec_part) / B
    enc_means = slab[:T, :, :Z_DIM]
    enc_stds = slab[:T, :, 3 * H_DIM + Z_DIM:]
    return kld, rec, (enc_means, enc_stds)


# ---------------------------------------------------------------------------
# Parameter init + pure-JAX reference
# ---------------------------------------------------------------------------
def init_params(key):
    shapes = {
        "W_emb": (P, H_DIM), "b_emb": (1, H_DIM),
        "W_enc1x": (H_DIM, H_DIM), "W_enc1h": (H_DIM, H_DIM), "b_enc1": (1, H_DIM),
        "W_enc2": (H_DIM, H_DIM), "b_enc2": (1, H_DIM),
        "W_encm": (H_DIM, Z_DIM), "b_encm": (1, Z_DIM),
        "W_encs": (H_DIM, Z_DIM), "b_encs": (1, Z_DIM),
        "W_phiz": (Z_DIM, H_DIM), "b_phiz": (1, H_DIM),
        "W_dec1z": (H_DIM, H_DIM), "W_dec1h": (H_DIM, H_DIM), "b_dec1": (1, H_DIM),
        "W_dec2": (H_DIM, P), "b_dec2": (1, P),
        "W_pri": (H_DIM, H_DIM), "b_pri": (1, H_DIM),
        "W_prim": (H_DIM, Z_DIM), "b_prim": (1, Z_DIM),
        "W_pris": (H_DIM, Z_DIM), "b_pris": (1, Z_DIM),
        "W_ir": (2 * H_DIM, H_DIM), "W_iz": (2 * H_DIM, H_DIM), "W_in_": (2 * H_DIM, H_DIM),
        "W_hr": (H_DIM, H_DIM), "W_hz": (H_DIM, H_DIM), "W_hn": (H_DIM, H_DIM),
    }
    keys = jax.random.split(key, len(WEIGHT_NAMES))
    # deterministic init, in the spirit of reset_parameters(stdv=0.1)
    return {name: 0.1 * jax.random.normal(k, shapes[name], jnp.float32)
            for k, name in zip(keys, WEIGHT_NAMES)}


def vrnn_reference(x_frames, eps, params):
    """Pure-JAX reference of the same forward pass (for correctness check)."""
    B, T = x_frames.shape[0], x_frames.shape[1]
    x_flat = x_frames.reshape(B, T, P)
    hp = lambda a, b: jnp.dot(a, b, precision=lax.Precision.HIGHEST)
    relu = lambda v: jnp.maximum(v, 0.0)
    p = params
    h = jnp.zeros((B, H_DIM), jnp.float32)
    kld = 0.0
    rec = 0.0
    ems, ess = [], []
    for t in range(T):
        xt = x_flat[:, t]
        xt_tilde = relu(hp(xt, p["W_emb"]) + p["b_emb"])
        e1 = relu(hp(xt_tilde, p["W_enc1x"]) + hp(h, p["W_enc1h"]) + p["b_enc1"])
        enc_t = relu(hp(e1, p["W_enc2"]) + p["b_enc2"])
        enc_mean = hp(enc_t, p["W_encm"]) + p["b_encm"]
        enc_std = _softplus(hp(enc_t, p["W_encs"]) + p["b_encs"])
        zt = eps[t] * enc_std + enc_mean
        zt_tilde = relu(hp(zt, p["W_phiz"]) + p["b_phiz"])
        d1 = relu(hp(zt_tilde, p["W_dec1z"]) + hp(h, p["W_dec1h"]) + p["b_dec1"])
        xt_hat = jax.nn.sigmoid(hp(d1, p["W_dec2"]) + p["b_dec2"])
        pri = relu(hp(h, p["W_pri"]) + p["b_pri"])
        prior_mean = hp(pri, p["W_prim"]) + p["b_prim"]
        prior_std = _softplus(hp(pri, p["W_pris"]) + p["b_pris"])
        rnn_in = jnp.concatenate([xt_tilde, zt_tilde], axis=1)
        r = jax.nn.sigmoid(hp(rnn_in, p["W_ir"]) + hp(h, p["W_hr"]))
        zg = jax.nn.sigmoid(hp(rnn_in, p["W_iz"]) + hp(h, p["W_hz"]))
        n = jnp.tanh(hp(rnn_in, p["W_in_"]) + r * hp(h, p["W_hn"]))
        h = (1.0 - zg) * n + zg * h
        kld_el = (2.0 * jnp.log(prior_std + EPS) - 2.0 * jnp.log(enc_std + EPS)
                  + (enc_std ** 2 + (enc_mean - prior_mean) ** 2) / (prior_std ** 2) - 1.0)
        kld = kld + 0.5 * jnp.sum(kld_el)
        rec = rec + jnp.sum((xt_hat - xt) ** 2)
        ems.append(enc_mean)
        ess.append(enc_std)
    return kld, rec / B, jnp.stack(ems), jnp.stack(ess)


if __name__ == "__main__":
    key = jax.random.PRNGKey(0)
    kp, kx, ke = jax.random.split(key, 3)

    B, T = 4, 6
    params = init_params(kp)
    x = jax.random.uniform(kx, (B, T, 1, X_DIM, X_DIM), jnp.float32)
    eps = jax.random.normal(ke, (T, B, Z_DIM), jnp.float32)

    kld, rec, (em, es) = vrnn_forward(x, eps, params)
    jax.block_until_ready((kld, rec, em, es))

    r_kld, r_rec, r_em, r_es = vrnn_reference(x, eps, params)
    np.testing.assert_allclose(np.asarray(kld), np.asarray(r_kld), rtol=2e-2, atol=2e-2)
    np.testing.assert_allclose(np.asarray(rec), np.asarray(r_rec), rtol=2e-2, atol=2e-2)
    np.testing.assert_allclose(np.asarray(em), np.asarray(r_em), rtol=2e-2, atol=2e-2)
    np.testing.assert_allclose(np.asarray(es), np.asarray(r_es), rtol=2e-2, atol=2e-2)

    print("KERNEL_OK")
</pallas_src>

<mosaic_0001>
module attributes {stable_mosaic.version = 11 : i64} {
  func.func @_embed_kernel(%arg0: i32, %arg1: memref<24x1024xf32, #tpu.memory_space<vmem>>, %arg2: memref<1024x32xf32, #tpu.memory_space<vmem>>, %arg3: memref<1x32xf32, #tpu.memory_space<vmem>>, %arg4: memref<24x32xf32, #tpu.memory_space<vmem>>) attributes {dimension_semantics = [#tpu.dimension_semantics<parallel>], iteration_bounds = array<i64: 1>, scalar_prefetch = 0 : i64, scratch_operands = 0 : i64, tpu.core_type = #tpu.core_type<tc>, window_params = [{transform_indices = @transform_0, window_bounds = array<i64: 24, 1024>}, {pipeline_mode = #tpu.pipeline_mode<synchronous>, transform_indices = @transform_1, window_bounds = array<i64: 1024, 32>}, {pipeline_mode = #tpu.pipeline_mode<synchronous>, transform_indices = @transform_2, window_bounds = array<i64: 1, 32>}, {transform_indices = @transform_3, window_bounds = array<i64: 24, 32>}]} {
    %c0 = arith.constant 0 : index
    %c0_0 = arith.constant 0 : index
    %0 = vector.load %arg1[%c0, %c0_0] : memref<24x1024xf32, #tpu.memory_space<vmem>>, vector<24x1024xf32>
    %1 = arith.truncf %0 : vector<24x1024xf32> to vector<24x1024xbf16>
    %c0_1 = arith.constant 0 : index
    %c0_2 = arith.constant 0 : index
    %2 = vector.load %arg2[%c0_1, %c0_2] : memref<1024x32xf32, #tpu.memory_space<vmem>>, vector<1024x32xf32>
    %3 = arith.truncf %2 : vector<1024x32xf32> to vector<1024x32xbf16>
    %cst = arith.constant dense<0.000000e+00> : vector<24x32xf32>
    %4 = tpu.matmul %1, %3, %cst {dimension_numbers = #tpu.dot_dimension_numbers<[1], [0], [0], [1], [0, 0, 1, 1], [], []>} : vector<24x1024xbf16>, vector<1024x32xbf16>, vector<24x32xf32> -> vector<24x32xf32>
    %c0_3 = arith.constant 0 : index
    %c0_4 = arith.constant 0 : index
    %5 = vector.load %arg3[%c0_3, %c0_4] : memref<1x32xf32, #tpu.memory_space<vmem>>, vector<1x32xf32>
    %6 = vector.broadcast %5 : vector<1x32xf32> to vector<24x32xf32>
    %7 = arith.addf %4, %6 : vector<24x32xf32>
    %cst_5 = arith.constant 0.000000e+00 : f32
    %8 = vector.broadcast %cst_5 : f32 to vector<24x32xf32>
    %9 = arith.maximumf %7, %8 : vector<24x32xf32>
    %c0_6 = arith.constant 0 : index
    %c0_7 = arith.constant 0 : index
    %10 = vector.load %arg4[%c0_6, %c0_7] : memref<24x32xf32, #tpu.memory_space<vmem>>, vector<24x32xf32>
    tpu.vector_store %arg4[%c0_6, %c0_7], %9 {strides = array<i32>} : memref<24x32xf32, #tpu.memory_space<vmem>>, vector<24x32xf32>,
    return
  }
  func.func @transform_0(%arg0: i32) -> (i32, i32) {
    %c0_i32 = arith.constant 0 : i32
    %c0_i32_0 = arith.constant 0 : i32
    return %arg0, %c0_i32 : i32, i32
  }
  func.func @transform_1(%arg0: i32) -> (i32, i32) {
    %c0_i32 = arith.constant 0 : i32
    %c0_i32_0 = arith.constant 0 : i32
    %c0_i32_1 = arith.constant 0 : i32
    return %c0_i32, %c0_i32_0 : i32, i32
  }
  func.func @transform_2(%arg0: i32) -> (i32, i32) {
    %c0_i32 = arith.constant 0 : i32
    %c0_i32_0 = arith.constant 0 : i32
    %c0_i32_1 = arith.constant 0 : i32
    return %c0_i32, %c0_i32_0 : i32, i32
  }
  func.func @transform_3(%arg0: i32) -> (i32, i32) {
    %c0_i32 = arith.constant 0 : i32
    %c0_i32_0 = arith.constant 0 : i32
    return %arg0, %c0_i32 : i32, i32
  }
}

</mosaic_0001>

<llo_original>
// kernel: tpu_custom_call.1
$region0: #{tpu_custom_call.1}
  #allocation0 [shape = 'u32[]', space=smem, size = 0x4, offset = 0x4, fixed_abs, tag = 'smem constant byte address 0x4 - core index']
  #allocation1 [shape = 'u32[72,128]{1,0:T(1,128)}', space=vmem, size = 0x9000, scoped, tag = 'internal scratch']
  %s0 = inlined_call_operand.vmem [shape: f32[24,1024], index: 0, kind: input, shape index: {}]
  %s1 = inlined_call_operand.vmem [shape: f32[1024,32], index: 1, kind: input, shape index: {}]
  %s2 = inlined_call_operand.vmem [shape: f32[1,32], index: 2, kind: input, shape index: {}]
  %s3 = inlined_call_operand.hbm [shape: f32[24,32], index: 3, kind: output, shape index: {}]
  %s4 = sld [smem:[#allocation0]]
  $region22: #{tpu_custom_call.1} parent=0
    _
  %s6 = ssub.s32 1, %s4
  %s7 = scalar_select 0, %s6, %s4
  $region1: #{tpu_custom_call.1} parent=0
    #allocation2 [shape = 'u8[12288]{0}', space=vmem, size = 0x3000, scoped, tag = 'output window, operand 0, single buffered']
    #allocation3 [shape = 's32[1]{0}', space=sflag, size = 0x4, scoped, tag = 'scoped memory for tpu_custom_call.1']
    %8 = vsyncpa [#allocation3], 0
    // Predicated region
    $region2: #{tpu_custom_call.1} parent=1 // pred_check
      _
    $region3: #{tpu_custom_call.1} parent=1 // pred_check_branch
      %10 = sbr.rel (0) target = $region5
    $region4: #{tpu_custom_call.1} parent=1 // pred_region
      _
    $region5: #{tpu_custom_call.1} parent=1 // pred_fallthru
      _
    // Predicated region
    $region6: #{tpu_custom_call.1} parent=1 // pred_check
      _
    $region7: #{tpu_custom_call.1} parent=1 // pred_check_branch
      %12 = sbr.rel (0) target = $region9
    $region8: #{tpu_custom_call.1} parent=1 // pred_region
      _
    $region9: #{tpu_custom_call.1} parent=1 // pred_fallthru
      _
    // Predicated region
    $region10: #{tpu_custom_call.1} parent=1 // pred_check
      _
    $region11: #{tpu_custom_call.1} parent=1 // pred_check_branch
      %14 = sbr.rel (0) target = $region13
    $region12: #{tpu_custom_call.1} parent=1 // pred_region
      _
    $region13: #{tpu_custom_call.1} parent=1 // pred_fallthru
      _
    %v15 = vld [vmem:[%s0] sm:$0xff]
    %v16 = vld [vmem:[%s0 + $0x8] sm:$0xff]
    %v17 = vld [vmem:[%s0 + $0x10] sm:$0xff]
    %v18 = vld [vmem:[%s0 + $0x18] sm:$0xff]
    %v19 = vld [vmem:[%s0 + $0x20] sm:$0xff]
    %v20 = vld [vmem:[%s0 + $0x28] sm:$0xff]
    %v21 = vld [vmem:[%s0 + $0x30] sm:$0xff]
    %v22 = vld [vmem:[%s0 + $0x38] sm:$0xff]
    %v23 = vld [vmem:[%s0 + $0x40] sm:$0xff]
    %v24 = vld [vmem:[%s0 + $0x48] sm:$0xff]
    %v25 = vld [vmem:[%s0 + $0x50] sm:$0xff]
    %v26 = vld [vmem:[%s0 + $0x58] sm:$0xff]
    %v27 = vld [vmem:[%s0 + $0x60] sm:$0xff]
    %v28 = vld [vmem:[%s0 + $0x68] sm:$0xff]
    %v29 = vld [vmem:[%s0 + $0x70] sm:$0xff]
    %v30 = vld [vmem:[%s0 + $0x78] sm:$0xff]
    %v31 = vld [vmem:[%s0 + $0x80] sm:$0xff]
    %v32 = vld [vmem:[%s0 + $0x88] sm:$0xff]
    %v33 = vld [vmem:[%s0 + $0x90] sm:$0xff]
    %v34 = vld [vmem:[%s0 + $0x98] sm:$0xff]
    %v35 = vld [vmem:[%s0 + $0xa0] sm:$0xff]
    %v36 = vld [vmem:[%s0 + $0xa8] sm:$0xff]
    %v37 = vld [vmem:[%s0 + $0xb0] sm:$0xff]
    %v38 = vld [vmem:[%s0 + $0xb8] sm:$0xff]
    %v39 = vpack.c.bf16 %v23, %v15
    %v40 = vpack.c.bf16 %v24, %v16
    %v41 = vpack.c.bf16 %v25, %v17
    %v42 = vpack.c.bf16 %v26, %v18
    %v43 = vpack.c.bf16 %v27, %v19
    %v44 = vpack.c.bf16 %v28, %v20
    %v45 = vpack.c.bf16 %v29, %v21
    %v46 = vpack.c.bf16 %v30, %v22
    %v47 = vpack.c.bf16 %v31, %v31
    %v48 = vpack.c.bf16 %v32, %v32
    %v49 = vpack.c.bf16 %v33, %v33
    %v50 = vpack.c.bf16 %v34, %v34
    %v51 = vpack.c.bf16 %v35, %v35
    %v52 = vpack.c.bf16 %v36, %v36
    %v53 = vpack.c.bf16 %v37, %v37
    %v54 = vpack.c.bf16 %v38, %v38
    %v55 = vld [vmem:[%s1] sm:$0xff]
    %v56 = vld [vmem:[%s1 + $0x8] sm:$0xff]
    %v57 = vld [vmem:[%s1 + $0x10] sm:$0xff]
    %v58 = vld [vmem:[%s1 + $0x18] sm:$0xff]
    %v59 = vld [vmem:[%s1 + $0x20] sm:$0xff]
    %v60 = vld [vmem:[%s1 + $0x28] sm:$0xff]
    %v61 = vld [vmem:[%s1 + $0x30] sm:$0xff]
    %v62 = vld [vmem:[%s1 + $0x38] sm:$0xff]
    %v63 = vld [vmem:[%s1 + $0x40] sm:$0xff]
    %v64 = vld [vmem:[%s1 + $0x48] sm:$0xff]
    %v65 = vld [vmem:[%s1 + $0x50] sm:$0xff]
    %v66 = vld [vmem:[%s1 + $0x58] sm:$0xff]
    %v67 = vld [vmem:[%s1 + $0x60] sm:$0xff]
    %v68 = vld [vmem:[%s1 + $0x68] sm:$0xff]
    %v69 = vld [vmem:[%s1 + $0x70] sm:$0xff]
    %v70 = vld [vmem:[%s1 + $0x78] sm:$0xff]
    %v71 = vld [vmem:[%s1 + $0x80] sm:$0xff]
    %v72 = vld [vmem:[%s1 + $0x88] sm:$0xff]
    %v73 = vld [vmem:[%s1 + $0x90] sm:$0xff]
    %v74 = vld [vmem:[%s1 + $0x98] sm:$0xff]
    %v75 = vld [vmem:[%s1 + $0xa0] sm:$0xff]
    %v76 = vld [vmem:[%s1 + $0xa8] sm:$0xff]
    %v77 = vld [vmem:[%s1 + $0xb0] sm:$0xff]
    %v78 = vld [vmem:[%s1 + $0xb8] sm:$0xff]
    %v79 = vld [vmem:[%s1 + $0xc0] sm:$0xff]
    %v80 = vld [vmem:[%s1 + $0xc8] sm:$0xff]
    %v81 = vld [vmem:[%s1 + $0xd0] sm:$0xff]
    %v82 = vld [vmem:[%s1 + $0xd8] sm:$0xff]
    %v83 = vld [vmem:[%s1 + $0xe0] sm:$0xff]
    %v84 = vld [vmem:[%s1 + $0xe8] sm:$0xff]
    %v85 = vld [vmem:[%s1 + $0xf0] sm:$0xff]
    %v86 = vld [vmem:[%s1 + $0xf8] sm:$0xff]
    %v87 = vld [vmem:[%s1 + $0x100] sm:$0xff]
    %v88 = vld [vmem:[%s1 + $0x108] sm:$0xff]
    %v89 = vld [vmem:[%s1 + $0x110] sm:$0xff]
    %v90 = vld [vmem:[%s1 + $0x118] sm:$0xff]
    %v91 = vld [vmem:[%s1 + $0x120] sm:$0xff]
    %v92 = vld [vmem:[%s1 + $0x128] sm:$0xff]
    %v93 = vld [vmem:[%s1 + $0x130] sm:$0xff]
    %v94 = vld [vmem:[%s1 + $0x138] sm:$0xff]
    %v95 = vld [vmem:[%s1 + $0x140] sm:$0xff]
    %v96 = vld [vmem:[%s1 + $0x148] sm:$0xff]
    %v97 = vld [vmem:[%s1 + $0x150] sm:$0xff]
    %v98 = vld [vmem:[%s1 + $0x158] sm:$0xff]
    %v99 = vld [vmem:[%s1 + $0x160] sm:$0xff]
    %v100 = vld [vmem:[%s1 + $0x168] sm:$0xff]
    %v101 = vld [vmem:[%s1 + $0x170] sm:$0xff]
    %v102 = vld [vmem:[%s1 + $0x178] sm:$0xff]
    %v103 = vld [vmem:[%s1 + $0x180] sm:$0xff]
    %v104 = vld [vmem:[%s1 + $0x188] sm:$0xff]
    %v105 = vld [vmem:[%s1 + $0x190] sm:$0xff]
    %v106 = vld [vmem:[%s1 + $0x198] sm:$0xff]
    %v107 = vld [vmem:[%s1 + $0x1a0] sm:$0xff]
    %v108 = vld [vmem:[%s1 + $0x1a8] sm:$0xff]
    %v109 = vld [vmem:[%s1 + $0x1b0] sm:$0xff]
    %v110 = vld [vmem:[%s1 + $0x1b8] sm:$0xff]
    %v111 = vld [vmem:[%s1 + $0x1c0] sm:$0xff]
    %v112 = vld [vmem:[%s1 + $0x1c8] sm:$0xff]
    %v113 = vld [vmem:[%s1 + $0x1d0] sm:$0xff]
    %v114 = vld [vmem:[%s1 + $0x1d8] sm:$0xff]
    %v115 = vld [vmem:[%s1 + $0x1e0] sm:$0xff]
    %v116 = vld [vmem:[%s1 + $0x1e8] sm:$0xff]
    %v117 = vld [vmem:[%s1 + $0x1f0] sm:$0xff]
    %v118 = vld [vmem:[%s1 + $0x1f8] sm:$0xff]
    %v119 = vld [vmem:[%s1 + $0x200] sm:$0xff]
    %v120 = vld [vmem:[%s1 + $0x208] sm:$0xff]
    %v121 = vld [vmem:[%s1 + $0x210] sm:$0xff]
    %v122 = vld [vmem:[%s1 + $0x218] sm:$0xff]
    %v123 = vld [vmem:[%s1 + $0x220] sm:$0xff]
    %v124 = vld [vmem:[%s1 + $0x228] sm:$0xff]
    %v125 = vld [vmem:[%s1 + $0x230] sm:$0xff]
    %v126 = vld [vmem:[%s1 + $0x238] sm:$0xff]
    %v127 = vld [vmem:[%s1 + $0x240] sm:$0xff]
    %v128 = vld [vmem:[%s1 + $0x248] sm:$0xff]
    %v129 = vld [vmem:[%s1 + $0x250] sm:$0xff]
    %v130 = vld [vmem:[%s1 + $0x258] sm:$0xff]
    %v131 = vld [vmem:[%s1 + $0x260] sm:$0xff]
    %v132 = vld [vmem:[%s1 + $0x268] sm:$0xff]
    %v133 = vld [vmem:[%s1 + $0x270] sm:$0xff]
    %v134 = vld [vmem:[%s1 + $0x278] sm:$0xff]
    %v135 = vld [vmem:[%s1 + $0x280] sm:$0xff]
    %v136 = vld [vmem:[%s1 + $0x288] sm:$0xff]
    %v137 = vld [vmem:[%s1 + $0x290] sm:$0xff]
    %v138 = vld [vmem:[%s1 + $0x298] sm:$0xff]
    %v139 = vld [vmem:[%s1 + $0x2a0] sm:$0xff]
    %v140 = vld [vmem:[%s1 + $0x2a8] sm:$0xff]
    %v141 = vld [vmem:[%s1 + $0x2b0] sm:$0xff]
    %v142 = vld [vmem:[%s1 + $0x2b8] sm:$0xff]
    %v143 = vld [vmem:[%s1 + $0x2c0] sm:$0xff]
    %v144 = vld [vmem:[%s1 + $0x2c8] sm:$0xff]
    %v145 = vld [vmem:[%s1 + $0x2d0] sm:$0xff]
    %v146 = vld [vmem:[%s1 + $0x2d8] sm:$0xff]
    %v147 = vld [vmem:[%s1 + $0x2e0] sm:$0xff]
    %v148 = vld [vmem:[%s1 + $0x2e8] sm:$0xff]
    %v149 = vld [vmem:[%s1 + $0x2f0] sm:$0xff]
    %v150 = vld [vmem:[%s1 + $0x2f8] sm:$0xff]
    %v151 = vld [vmem:[%s1 + $0x300] sm:$0xff]
    %v152 = vld [vmem:[%s1 + $0x308] sm:$0xff]
    %v153 = vld [vmem:[%s1 + $0x310] sm:$0xff]
    %v154 = vld [vmem:[%s1 + $0x318] sm:$0xff]
    %v155 = vld [vmem:[%s1 + $0x320] sm:$0xff]
    %v156 = vld [vmem:[%s1 + $0x328] sm:$0xff]
    %v157 = vld [vmem:[%s1 + $0x330] sm:$0xff]
    %v158 = vld [vmem:[%s1 + $0x338] sm:$0xff]
    %v159 = vld [vmem:[%s1 + $0x340] sm:$0xff]
    %v160 = vld [vmem:[%s1 + $0x348] sm:$0xff]
    %v161 = vld [vmem:[%s1 + $0x350] sm:$0xff]
    %v162 = vld [vmem:[%s1 + $0x358] sm:$0xff]
    %v163 = vld [vmem:[%s1 + $0x360] sm:$0xff]
    %v164 = vld [vmem:[%s1 + $0x368] sm:$0xff]
    %v165 = vld [vmem:[%s1 + $0x370] sm:$0xff]
    %v166 = vld [vmem:[%s1 + $0x378] sm:$0xff]
    %v167 = vld [vmem:[%s1 + $0x380] sm:$0xff]
    %v168 = vld [vmem:[%s1 + $0x388] sm:$0xff]
    %v169 = vld [vmem:[%s1 + $0x390] sm:$0xff]
    %v170 = vld [vmem:[%s1 + $0x398] sm:$0xff]
    %v171 = vld [vmem:[%s1 + $0x3a0] sm:$0xff]
    %v172 = vld [vmem:[%s1 + $0x3a8] sm:$0xff]
    %v173 = vld [vmem:[%s1 + $0x3b0] sm:$0xff]
    %v174 = vld [vmem:[%s1 + $0x3b8] sm:$0xff]
    %v175 = vld [vmem:[%s1 + $0x3c0] sm:$0xff]
    %v176 = vld [vmem:[%s1 + $0x3c8] sm:$0xff]
    %v177 = vld [vmem:[%s1 + $0x3d0] sm:$0xff]
    %v178 = vld [vmem:[%s1 + $0x3d8] sm:$0xff]
    %v179 = vld [vmem:[%s1 + $0x3e0] sm:$0xff]
    %v180 = vld [vmem:[%s1 + $0x3e8] sm:$0xff]
    %v181 = vld [vmem:[%s1 + $0x3f0] sm:$0xff]
    %v182 = vld [vmem:[%s1 + $0x3f8] sm:$0xff]
    %v183 = vpack.c.bf16 %v56, %v55
    %v184 = vpack.c.bf16 %v58, %v57
    %v185 = vpack.c.bf16 %v60, %v59
    %v186 = vpack.c.bf16 %v62, %v61
    %v187 = vpack.c.bf16 %v64, %v63
    %v188 = vpack.c.bf16 %v66, %v65
    %v189 = vpack.c.bf16 %v68, %v67
    %v190 = vpack.c.bf16 %v70, %v69
    %v191 = vpack.c.bf16 %v72, %v71
    %v192 = vpack.c.bf16 %v74, %v73
    %v193 = vpack.c.bf16 %v76, %v75
    %v194 = vpack.c.bf16 %v78, %v77
    %v195 = vpack.c.bf16 %v80, %v79
    %v196 = vpack.c.bf16 %v82, %v81
    %v197 = vpack.c.bf16 %v84, %v83
    %v198 = vpack.c.bf16 %v86, %v85
    %v199 = vpack.c.bf16 %v88, %v87
    %v200 = vpack.c.bf16 %v90, %v89
    %v201 = vpack.c.bf16 %v92, %v91
    %v202 = vpack.c.bf16 %v94, %v93
    %v203 = vpack.c.bf16 %v96, %v95
    %v204 = vpack.c.bf16 %v98, %v97
    %v205 = vpack.c.bf16 %v100, %v99
    %v206 = vpack.c.bf16 %v102, %v101
    %v207 = vpack.c.bf16 %v104, %v103
    %v208 = vpack.c.bf16 %v106, %v105
    %v209 = vpack.c.bf16 %v108, %v107
    %v210 = vpack.c.bf16 %v110, %v109
    %v211 = vpack.c.bf16 %v112, %v111
    %v212 = vpack.c.bf16 %v114, %v113
    %v213 = vpack.c.bf16 %v116, %v115
    %v214 = vpack.c.bf16 %v118, %v117
    %v215 = vpack.c.bf16 %v120, %v119
    %v216 = vpack.c.bf16 %v122, %v121
    %v217 = vpack.c.bf16 %v124, %v123
    %v218 = vpack.c.bf16 %v126, %v125
    %v219 = vpack.c.bf16 %v128, %v127
    %v220 = vpack.c.bf16 %v130, %v129
    %v221 = vpack.c.bf16 %v132, %v131
    %v222 = vpack.c.bf16 %v134, %v133
    %v223 = vpack.c.bf16 %v136, %v135
    %v224 = vpack.c.bf16 %v138, %v137
    %v225 = vpack.c.bf16 %v140, %v139
    %v226 = vpack.c.bf16 %v142, %v141
    %v227 = vpack.c.bf16 %v144, %v143
    %v228 = vpack.c.bf16 %v146, %v145
    %v229 = vpack.c.bf16 %v148, %v147
    %v230 = vpack.c.bf16 %v150, %v149
    %v231 = vpack.c.bf16 %v152, %v151
    %v232 = vpack.c.bf16 %v154, %v153
    %v233 = vpack.c.bf16 %v156, %v155
    %v234 = vpack.c.bf16 %v158, %v157
    %v235 = vpack.c.bf16 %v160, %v159
    %v236 = vpack.c.bf16 %v162, %v161
    %v237 = vpack.c.bf16 %v164, %v163
    %v238 = vpack.c.bf16 %v166, %v165
    %v239 = vpack.c.bf16 %v168, %v167
    %v240 = vpack.c.bf16 %v170, %v169
    %v241 = vpack.c.bf16 %v172, %v171
    %v242 = vpack.c.bf16 %v174, %v173
    %v243 = vpack.c.bf16 %v176, %v175
    %v244 = vpack.c.bf16 %v178, %v177
    %v245 = vpack.c.bf16 %v180, %v179
    %v246 = vpack.c.bf16 %v182, %v181
    %v247 = vld [vmem:[%s2] sm:$0x1]
    %v249 = vperm.slane %v247, 0
    %251 = vmatpush.bf16.msra.mxu0 %v190
    %252 = vmatpush.bf16.msra.mxu0 %v189
    %253 = vmatpush.bf16.msra.mxu0 %v188
    %254 = vmatpush.bf16.msra.mxu0 %v187
    %255 = vmatpush.bf16.msra.mxu0 %v186
    %256 = vmatpush.bf16.msra.mxu0 %v185
    %257 = vmatpush.bf16.msra.mxu0 %v184
    %258 = vmatpush.bf16.msra.mxu0 %v183
    %259 = vmatmul.bf16.gmra.mxu0 %v39
    %v260 = vpop.f32.mrf.mxu0
    %v261 = vadd.f32 %v249, %v260
    %v262 = vpop.f32.mrf.mxu0
    %v263 = vadd.f32 %v249, %v262
    %264 = vmatmul.bf16.gmra.mxu0 %v47
    %v265 = vpop.f32.mrf.mxu0
    %v266 = vadd.f32 %v249, %v265
    %v267 = vpop.f32.mrf.mxu0
    %268 = vdwg.mxu0
    %269 = vmatpush.bf16.msra.mxu0 %v198
    %270 = vmatpush.bf16.msra.mxu0 %v197
    %271 = vmatpush.bf16.msra.mxu0 %v196
    %272 = vmatpush.bf16.msra.mxu0 %v195
    %273 = vmatpush.bf16.msra.mxu0 %v194
    %274 = vmatpush.bf16.msra.mxu0 %v193
    %275 = vmatpush.bf16.msra.mxu0 %v192
    %276 = vmatpush.bf16.msra.mxu0 %v191
    %277 = vmatmul.bf16.gmra.mxu0 %v40
    %v278 = vpop.f32.mrf.mxu0
    %v279 = vadd.f32 %v261, %v278
    %v280 = vpop.f32.mrf.mxu0
    %v281 = vadd.f32 %v263, %v280
    %282 = vmatmul.bf16.gmra.mxu0 %v48
    %v283 = vpop.f32.mrf.mxu0
    %v284 = vadd.f32 %v266, %v283
    %v285 = vpop.f32.mrf.mxu0
    %286 = vdwg.mxu0
    %287 = vmatpush.bf16.msra.mxu0 %v206
    %288 = vmatpush.bf16.msra.mxu0 %v205
    %289 = vmatpush.bf16.msra.mxu0 %v204
    %290 = vmatpush.bf16.msra.mxu0 %v203
    %291 = vmatpush.bf16.msra.mxu0 %v202
    %292 = vmatpush.bf16.msra.mxu0 %v201
    %293 = vmatpush.bf16.msra.mxu0 %v200
    %294 = vmatpush.bf16.msra.mxu0 %v199
    %295 = vmatmul.bf16.gmra.mxu0 %v41
    %v296 = vpop.f32.mrf.mxu0
    %v297 = vadd.f32 %v279, %v296
    %v298 = vpop.f32.mrf.mxu0
    %v299 = vadd.f32 %v281, %v298
    %300 = vmatmul.bf16.gmra.mxu0 %v49
    %v301 = vpop.f32.mrf.mxu0
    %v302 = vadd.f32 %v284, %v301
    %v303 = vpop.f32.mrf.mxu0
    %304 = vdwg.mxu0
    %305 = vmatpush.bf16.msra.mxu0 %v214
    %306 = vmatpush.bf16.msra.mxu0 %v213
    %307 = vmatpush.bf16.msra.mxu0 %v212
    %308 = vmatpush.bf16.msra.mxu0 %v211
    %309 = vmatpush.bf16.msra.mxu0 %v210
    %310 = vmatpush.bf16.msra.mxu0 %v209
    %311 = vmatpush.bf16.msra.mxu0 %v208
    %312 = vmatpush.bf16.msra.mxu0 %v207
    %313 = vmatmul.bf16.gmra.mxu0 %v42
    %v314 = vpop.f32.mrf.mxu0
    %v315 = vadd.f32 %v297, %v314
    %v316 = vpop.f32.mrf.mxu0
    %v317 = vadd.f32 %v299, %v316
    %318 = vmatmul.bf16.gmra.mxu0 %v50
    %v319 = vpop.f32.mrf.mxu0
    %v320 = vadd.f32 %v302, %v319
    %v321 = vpop.f32.mrf.mxu0
    %322 = vdwg.mxu0
    %323 = vmatpush.bf16.msra.mxu0 %v222
    %324 = vmatpush.bf16.msra.mxu0 %v221
    %325 = vmatpush.bf16.msra.mxu0 %v220
    %326 = vmatpush.bf16.msra.mxu0 %v219
    %327 = vmatpush.bf16.msra.mxu0 %v218
    %328 = vmatpush.bf16.msra.mxu0 %v217
    %329 = vmatpush.bf16.msra.mxu0 %v216
    %330 = vmatpush.bf16.msra.mxu0 %v215
    %331 = vmatmul.bf16.gmra.mxu0 %v43
    %v332 = vpop.f32.mrf.mxu0
    %v333 = vadd.f32 %v315, %v332
    %v334 = vpop.f32.mrf.mxu0
    %v335 = vadd.f32 %v317, %v334
    %336 = vmatmul.bf16.gmra.mxu0 %v51
    %v337 = vpop.f32.mrf.mxu0
    %v338 = vadd.f32 %v320, %v337
    %v339 = vpop.f32.mrf.mxu0
    %340 = vdwg.mxu0
    %341 = vmatpush.bf16.msra.mxu0 %v230
    %342 = vmatpush.bf16.msra.mxu0 %v229
    %343 = vmatpush.bf16.msra.mxu0 %v228
    %344 = vmatpush.bf16.msra.mxu0 %v227
    %345 = vmatpush.bf16.msra.mxu0 %v226
    %346 = vmatpush.bf16.msra.mxu0 %v225
    %347 = vmatpush.bf16.msra.mxu0 %v224
    %348 = vmatpush.bf16.msra.mxu0 %v223
    %349 = vmatmul.bf16.gmra.mxu0 %v44
    %v350 = vpop.f32.mrf.mxu0
    %v351 = vadd.f32 %v333, %v350
    %v352 = vpop.f32.mrf.mxu0
    %v353 = vadd.f32 %v335, %v352
    %354 = vmatmul.bf16.gmra.mxu0 %v52
    %v355 = vpop.f32.mrf.mxu0
    %v356 = vadd.f32 %v338, %v355
    %v357 = vpop.f32.mrf.mxu0
    %358 = vdwg.mxu0
    %359 = vmatpush.bf16.msra.mxu0 %v238
    %360 = vmatpush.bf16.msra.mxu0 %v237
    %361 = vmatpush.bf16.msra.mxu0 %v236
    %362 = vmatpush.bf16.msra.mxu0 %v235
    %363 = vmatpush.bf16.msra.mxu0 %v234
    %364 = vmatpush.bf16.msra.mxu0 %v233
    %365 = vmatpush.bf16.msra.mxu0 %v232
    %366 = vmatpush.bf16.msra.mxu0 %v231
    %367 = vmatmul.bf16.gmra.mxu0 %v45
    %v368 = vpop.f32.mrf.mxu0
    %v369 = vadd.f32 %v351, %v368
    %v370 = vpop.f32.mrf.mxu0
    %v371 = vadd.f32 %v353, %v370
    %372 = vmatmul.bf16.gmra.mxu0 %v53
    %v373 = vpop.f32.mrf.mxu0
    %v374 = vadd.f32 %v356, %v373
    %v375 = vpop.f32.mrf.mxu0
    %376 = vdwg.mxu0
    %377 = vmatpush.bf16.msra.mxu0 %v246
    %378 = vmatpush.bf16.msra.mxu0 %v245
    %379 = vmatpush.bf16.msra.mxu0 %v244
    %380 = vmatpush.bf16.msra.mxu0 %v243
    %381 = vmatpush.bf16.msra.mxu0 %v242
    %382 = vmatpush.bf16.msra.mxu0 %v241
    %383 = vmatpush.bf16.msra.mxu0 %v240
    %384 = vmatpush.bf16.msra.mxu0 %v239
    %385 = vmatmul.bf16.gmra.mxu0 %v46
    %v386 = vpop.f32.mrf.mxu0
    %v387 = vadd.f32 %v369, %v386
    %v388 = vpop.f32.mrf.mxu0
    %v389 = vadd.f32 %v371, %v388
    %390 = vmatmul.bf16.gmra.mxu0 %v54
    %v391 = vpop.f32.mrf.mxu0
    %v392 = vadd.f32 %v374, %v391
    %v393 = vpop.f32.mrf.mxu0
    %394 = vdwg.mxu0
    %v395 = vmax.f32 %v387, 0.0
    %v396 = vmax.f32 %v389, 0.0
    %v397 = vmax.f32 %v392, 0.0
    %vm398 = vcmask 261120
    %399 = vst.msk [vmem:[#allocation2] sm:$0xff] %vm398, %v395
    %400 = vst.msk [vmem:[#allocation2 + $0x8] sm:$0xff] %vm398, %v396
    %401 = vst.msk [vmem:[#allocation2 + $0x10] sm:$0xff] %vm398, %v397
    // Predicated region
    $region14: #{tpu_custom_call.1} parent=1 // pred_check
      _
    $region15: #{tpu_custom_call.1} parent=1 // pred_check_branch
      %403 = sbr.rel (0) target = $region17
    $region16: #{tpu_custom_call.1} parent=1 // pred_region
      %405 = vsyncadd [#allocation3], 0
      %s406 = sshll.u32 [#allocation2], 4
      %s407 = int_to_ptr.vmem [resolvable:$true] %s406
      %s408 = sshll.u32 %s3, 4
      %s409 = int_to_ptr.hbm [resolvable:$true] %s408
      %414 = dma.vmem_to_hbm [thread:$0]  %s407, 384, %s409, [#allocation3], 128, 128, 8
    $region17: #{tpu_custom_call.1} parent=1 // pred_fallthru
      _
    // Predicated region
    $region18: #{tpu_custom_call.1} parent=1 // pred_check
      _
    $region19: #{tpu_custom_call.1} parent=1 // pred_check_branch
      %416 = sbr.rel (0) target = $region21
    $region20: #{tpu_custom_call.1} parent=1 // pred_region
      %418 = dma.done [#allocation3], 384
    $region21: #{tpu_custom_call.1} parent=1 // pred_fallthru
      _
    %419 = vsyncpa [#allocation3], 1

</llo_original>
